<compile_context>
chip_gen: v6e
topology: v6e:2x2x1
jax: 0.10.0
libtpu: 0.0.40
codegen_flags: <defaults>
</compile_context>

<pallas_src>
import functools

import jax
import jax.numpy as jnp
import numpy as np
from jax.experimental import pallas as pl
from jax.experimental.pallas import tpu as pltpu


# ----------------------------- Pallas kernel -------------------------------- #

def _basic_block_kernel(x_ref, w1_ref, b1_ref, w2_ref, b2_ref, wsc_ref,
                        o_ref, xp_scr, mid_scr, *, stride, h, ho, b_tile):
    # x_ref  : (b_tile, H, W*Cin)            lane-dense input rows (f32)
    # w1_ref : (3, W*Cin, Wo*planes)         conv1 block weights (per kh), BN1 folded
    # b1_ref : (1, Wo*planes)                BN1 bias, tiled lane-dense (f32)
    # w2_ref : (3, Wo*planes, Wo*planes)     conv2 block weights, BN2 folded
    # b2_ref : (1, Wo*planes)                BN2 bias + shortcut bias, pre-summed
    # wsc_ref: (W*Cin, Wo*planes)            shortcut block weight (identity or 1x1+BN)
    # o_ref  : (b_tile, Ho, Wo*planes)       lane-dense output
    # xp_scr : (b_tile*(H+2), W*Cin)         f32 H-padded input rows
    # mid_scr: (b_tile*(Ho+2), Wo*planes)    f32 H-padded conv1 output rows
    cdt = w1_ref.dtype                       # MXU operand dtype (bf16 or f32)
    wcin = x_ref.shape[2]
    nmid = o_ref.shape[2]
    zrow_x = jnp.zeros((1, wcin), jnp.float32)
    zrow_m = jnp.zeros((1, nmid), jnp.float32)

    def row_slab(scr, start, step):
        # H stride folded here (one strided sublane slice per kernel row, i.e. 3
        # per conv, instead of one per tap); W stride/pad live in the weights.
        if step == 1:
            return scr[start:start + ho, :]
        return scr[pl.ds(start, ho, step), :]

    for b in range(b_tile):                  # static unroll over images in the tile
        xb = b * (h + 2)                     # base row of this image in xp_scr
        mb = b * (ho + 2)                    # base row of this image in mid_scr

        # 1-row H-pad borders (cheap, megacore-safe; never read stale data).
        xp_scr[xb:xb + 1, :] = zrow_x
        xp_scr[xb + h + 1:xb + h + 2, :] = zrow_x
        mid_scr[mb:mb + 1, :] = zrow_m
        mid_scr[mb + ho + 1:mb + ho + 2, :] = zrow_m
        # Interior: lane-aligned, lane-dense copy of the input rows.
        xp_scr[xb + 1:xb + 1 + h, :] = x_ref[b]

        # ---- conv1 + bn1 + relu : 3 accumulating matmuls (one per kernel row) ---
        acc1 = jnp.dot(row_slab(xp_scr, xb + 0, stride).astype(cdt), w1_ref[0],
                       preferred_element_type=jnp.float32)
        for kh in (1, 2):
            acc1 += jnp.dot(row_slab(xp_scr, xb + kh, stride).astype(cdt), w1_ref[kh],
                            preferred_element_type=jnp.float32)
        # Lane-dense end-to-end: straight into the mid scratch interior.
        mid_scr[mb + 1:mb + 1 + ho, :] = jnp.maximum(acc1 + b1_ref[...], 0.0)

        # ---- shortcut (identity or projection) seeds the conv2 accumulator ------
        acc2 = jnp.dot(row_slab(xp_scr, xb + 1, stride).astype(cdt), wsc_ref[...],
                       preferred_element_type=jnp.float32)
        # ---- conv2 + bn2 : 3 more accumulating matmuls --------------------------
        for kh in (0, 1, 2):
            acc2 += jnp.dot(mid_scr[mb + kh:mb + kh + ho, :].astype(cdt), w2_ref[kh],
                            preferred_element_type=jnp.float32)

        # ---- residual already accumulated; bias-add + relu, lane-dense store ----
        o_ref[b] = jnp.maximum(acc2 + b2_ref[...], 0.0).astype(o_ref.dtype)


# --------------------------- host-side weight prep --------------------------- #

def _fold_bn(bn, eps=1e-5):
    scale = bn["gamma"] * jax.lax.rsqrt(bn["var"] + eps)
    bias = bn["beta"] - bn["mean"] * scale
    return scale, bias


def _conv3x3_block_weights(w_oihw, scale, w_in, wo, stride):
    """Per-kh block weights (3, w_in*cin, wo*cout) with kw shifts / W-pad / W-stride
    baked in: block[kh][(j*s+kw-1)*cin + ci, j*cout + co] = w[kh,kw,ci,co]*scale[co]."""
    cin = w_oihw.shape[1]
    wf = jnp.transpose(w_oihw, (2, 3, 1, 0)) * scale   # (3,3,cin,cout), BN fold in f32
    blocks = []
    for kh in range(3):
        acc = jnp.zeros((w_in * cin, wo * w_oihw.shape[0]), jnp.float32)
        for kw in range(3):
            ow = np.arange(wo)
            iw = ow * stride + kw - 1
            valid = (iw >= 0) & (iw < w_in)            # out-of-range == zero padding
            sel = np.zeros((w_in, wo), np.float32)
            sel[iw[valid], ow[valid]] = 1.0
            acc = acc + jnp.kron(jnp.asarray(sel), wf[kh, kw])
        blocks.append(acc)
    return jnp.stack(blocks)                           # (3, w_in*cin, wo*cout)


def _conv1x1_block_weight(w_io, w_in, wo, stride):
    """Block weight (w_in*cin, wo*cout) for a 1x1 stride-s conv (or identity)."""
    ow = np.arange(wo)
    sel = np.zeros((w_in, wo), np.float32)
    sel[ow * stride, ow] = 1.0
    return jnp.kron(jnp.asarray(sel), w_io)


# ------------------------------ wrappers ------------------------------------ #

def basic_block_nhwc(x_nhwc, params, *, stride, b_tile=1,
                     operand_dtype=jnp.bfloat16):
    n, h, w, cin = x_nhwc.shape
    planes = params["conv1_w"].shape[0]
    ho = (h + 2 - 3) // stride + 1
    wo = (w + 2 - 3) // stride + 1
    nmid = wo * planes
    assert n % b_tile == 0, "batch must be divisible by b_tile"
    has_proj = (stride != 1) or (cin != planes)

    s1, b1 = _fold_bn(params["bn1"])
    s2, b2 = _fold_bn(params["bn2"])

    w1blk = _conv3x3_block_weights(params["conv1_w"], s1, w, wo, stride)
    w2blk = _conv3x3_block_weights(params["conv2_w"], s2, wo, wo, 1)

    if has_proj:
        ssc, bsc = _fold_bn(params["bn_sc"])
        wsc = params["conv_sc_w"][:, :, 0, 0].T * ssc[None, :]   # (cin, planes)
    else:
        wsc = jnp.eye(cin, dtype=jnp.float32)                    # identity shortcut
        bsc = jnp.zeros((planes,), jnp.float32)
    wscblk = _conv1x1_block_weight(wsc, w, wo, stride)

    b1_t = jnp.tile(b1, wo)[None, :].astype(jnp.float32)          # (1, wo*planes)
    b2_t = jnp.tile(b2 + bsc, wo)[None, :].astype(jnp.float32)    # bn2 + shortcut bias

    # MXU operand dtype: bf16 by default (f32 accumulation in-kernel). BN fold was
    # done in f32 above; only the final operands are narrowed.
    w1blk = w1blk.astype(operand_dtype)
    w2blk = w2blk.astype(operand_dtype)
    wscblk = wscblk.astype(operand_dtype)

    x_ld = x_nhwc.reshape(n, h, w * cin)                          # lane-dense input

    kern = functools.partial(_basic_block_kernel, stride=stride, h=h, ho=ho,
                             b_tile=b_tile)
    out = pl.pallas_call(
        kern,
        out_shape=jax.ShapeDtypeStruct((n, ho, nmid), x_nhwc.dtype),
        grid=(n // b_tile,),
        in_specs=[
            pl.BlockSpec((b_tile, h, w * cin), lambda i: (i, 0, 0)),
            pl.BlockSpec((3, w * cin, nmid), lambda i: (0, 0, 0)),
            pl.BlockSpec((1, nmid), lambda i: (0, 0)),
            pl.BlockSpec((3, nmid, nmid), lambda i: (0, 0, 0)),
            pl.BlockSpec((1, nmid), lambda i: (0, 0)),
            pl.BlockSpec((w * cin, nmid), lambda i: (0, 0)),
        ],
        out_specs=pl.BlockSpec((b_tile, ho, nmid), lambda i: (i, 0, 0)),
        scratch_shapes=[
            pltpu.VMEM((b_tile * (h + 2), w * cin), jnp.float32),    # H-padded input
            pltpu.VMEM((b_tile * (ho + 2), nmid), jnp.float32),      # H-padded conv1 out
        ],
        compiler_params=pltpu.CompilerParams(dimension_semantics=("parallel",)),
    )(x_ld, w1blk, b1_t, w2blk, b2_t, wscblk)
    return out.reshape(n, ho, wo, planes)


def basic_block_forward(x_nchw, params, *, stride, b_tile=1,
                        operand_dtype=jnp.bfloat16):
    """out = relu(bn2(conv2(relu(bn1(conv1(x))))) + shortcut(x)). NCHW in/out."""
    x = jnp.transpose(x_nchw, (0, 2, 3, 1))            # NCHW -> NHWC (once per block
    out = basic_block_nhwc(x, params, stride=stride,   # here; once per model in a
                           b_tile=b_tile,              # full ResNet)
                           operand_dtype=operand_dtype)
    return jnp.transpose(out, (0, 3, 1, 2))            # NHWC -> NCHW


# ------------------------------ reference (JAX) ------------------------------ #

def _ref_conv(x_nhwc, w_oihw, stride, pad):
    w_hwio = jnp.transpose(w_oihw, (2, 3, 1, 0))
    return jax.lax.conv_general_dilated(
        x_nhwc, w_hwio, (stride, stride), [(pad, pad), (pad, pad)],
        dimension_numbers=("NHWC", "HWIO", "NHWC"))


def basic_block_reference(x_nchw, params, *, stride):
    x = jnp.transpose(x_nchw, (0, 2, 3, 1))
    cin = x.shape[-1]
    planes = params["conv1_w"].shape[0]
    s1, b1 = _fold_bn(params["bn1"])
    out = jnp.maximum(_ref_conv(x, params["conv1_w"], stride, 1) * s1 + b1, 0.0)
    s2, b2 = _fold_bn(params["bn2"])
    out = _ref_conv(out, params["conv2_w"], 1, 1) * s2 + b2
    if stride != 1 or cin != planes:
        ss, bs = _fold_bn(params["bn_sc"])
        sc = _ref_conv(x, params["conv_sc_w"], stride, 0) * ss + bs
    else:
        sc = x
    out = jnp.maximum(out + sc, 0.0)
    return jnp.transpose(out, (0, 3, 1, 2))


# ----------------------------------- main ------------------------------------ #

def _make_params(key, in_planes, planes):
    ks = jax.random.split(key, 12)

    def bn_params(k0, k1, k2, k3, c):
        return {
            "gamma": jax.random.uniform(k0, (c,), jnp.float32, 0.5, 1.5),
            "beta": 0.1 * jax.random.normal(k1, (c,), jnp.float32),
            "mean": 0.1 * jax.random.normal(k2, (c,), jnp.float32),
            "var": jax.random.uniform(k3, (c,), jnp.float32, 0.5, 1.5),
        }

    params = {
        "conv1_w": 0.2 * jax.random.normal(ks[0], (planes, in_planes, 3, 3), jnp.float32),
        "bn1": bn_params(ks[1], ks[2], ks[3], ks[4], planes),
        "conv2_w": 0.2 * jax.random.normal(ks[5], (planes, planes, 3, 3), jnp.float32),
        "bn2": bn_params(ks[6], ks[7], ks[8], ks[9], planes),
        "conv_sc_w": 0.2 * jax.random.normal(ks[10], (planes, in_planes, 1, 1), jnp.float32),
    }
    kb = jax.random.split(ks[11], 4)
    params["bn_sc"] = bn_params(kb[0], kb[1], kb[2], kb[3], planes)
    return params


def _run_case(key, n, in_planes, planes, h, w, stride, b_tile=1):
    kx, kp = jax.random.split(key)
    x = jax.random.normal(kx, (n, in_planes, h, w), jnp.float32)   # NCHW like PyTorch
    params = _make_params(kp, in_planes, planes)
    ref = basic_block_reference(x, params, stride=stride)

    # Structural check: f32 MXU operands, tight tolerance.
    out_f32 = jax.block_until_ready(
        basic_block_forward(x, params, stride=stride, b_tile=b_tile,
                            operand_dtype=jnp.float32))
    np.testing.assert_allclose(np.asarray(out_f32), np.asarray(ref),
                               rtol=1e-3, atol=1e-3)

    # Production path: bf16 MXU operands, f32 accumulation/epilogue.  Tolerance is
    # loosened for the expected bf16 operand rounding (not a structural error).
    out_bf16 = jax.block_until_ready(
        basic_block_forward(x, params, stride=stride, b_tile=b_tile))
    np.testing.assert_allclose(np.asarray(out_bf16), np.asarray(ref),
                               rtol=5e-2, atol=1e-1)

    ho = (h + 2 - 3) // stride + 1
    wo = (w + 2 - 3) // stride + 1
    assert out_f32.shape == (n, planes, ho, wo)


if __name__ == "__main__":
    key = jax.random.PRNGKey(0)
    k1, k2, k3 = jax.random.split(key, 3)

    # Case 1: channel mismatch (4 -> 8) triggers the 1x1-conv + BN projection shortcut.
    _run_case(k1, n=2, in_planes=4, planes=8, h=16, w=16, stride=1)
    # Case 2: identity shortcut (in_planes == planes, stride == 1).
    _run_case(k2, n=2, in_planes=8, planes=8, h=16, w=16, stride=1)
    # Case 3: two images per grid step (b_tile=2) with the projection shortcut.
    _run_case(k3, n=4, in_planes=4, planes=8, h=16, w=16, stride=1, b_tile=2)

    print("KERNEL_OK")
</pallas_src>

<mosaic_0001>
module attributes {stable_mosaic.version = 11 : i64} {
  func.func @_basic_block_kernel(%arg0: i32, %arg1: memref<1x16x64xf32, #tpu.memory_space<vmem>>, %arg2: memref<3x64x128xf32, #tpu.memory_space<vmem>>, %arg3: memref<1x128xf32, #tpu.memory_space<vmem>>, %arg4: memref<3x128x128xf32, #tpu.memory_space<vmem>>, %arg5: memref<1x128xf32, #tpu.memory_space<vmem>>, %arg6: memref<64x128xf32, #tpu.memory_space<vmem>>, %arg7: memref<1x16x128xf32, #tpu.memory_space<vmem>>, %arg8: memref<18x64xf32, #tpu.memory_space<vmem>>, %arg9: memref<18x128xf32, #tpu.memory_space<vmem>>) attributes {dimension_semantics = [#tpu.dimension_semantics<parallel>], iteration_bounds = array<i64: 2>, scalar_prefetch = 0 : i64, scratch_operands = 2 : i64, tpu.core_type = #tpu.core_type<tc>, window_params = [{transform_indices = @transform_0, window_bounds = array<i64: 1, 16, 64>}, {pipeline_mode = #tpu.pipeline_mode<synchronous>, transform_indices = @transform_1, window_bounds = array<i64: 3, 64, 128>}, {pipeline_mode = #tpu.pipeline_mode<synchronous>, transform_indices = @transform_2, window_bounds = array<i64: 1, 128>}, {pipeline_mode = #tpu.pipeline_mode<synchronous>, transform_indices = @transform_3, window_bounds = array<i64: 3, 128, 128>}, {pipeline_mode = #tpu.pipeline_mode<synchronous>, transform_indices = @transform_4, window_bounds = array<i64: 1, 128>}, {pipeline_mode = #tpu.pipeline_mode<synchronous>, transform_indices = @transform_5, window_bounds = array<i64: 64, 128>}, {transform_indices = @transform_6, window_bounds = array<i64: 1, 16, 128>}]} {
    %cst = arith.constant 0.000000e+00 : f32
    %0 = vector.broadcast %cst : f32 to vector<1x64xf32>
    %cst_0 = arith.constant 0.000000e+00 : f32
    %1 = vector.broadcast %cst_0 : f32 to vector<1x128xf32>
    %c0 = arith.constant 0 : index
    %c0_1 = arith.constant 0 : index
    %2 = vector.load %arg8[%c0, %c0_1] : memref<18x64xf32, #tpu.memory_space<vmem>>, vector<1x64xf32>
    tpu.vector_store %arg8[%c0, %c0_1], %0 {strides = array<i32>} : memref<18x64xf32, #tpu.memory_space<vmem>>, vector<1x64xf32>,
    %c17 = arith.constant 17 : index
    %c0_2 = arith.constant 0 : index
    %3 = vector.load %arg8[%c17, %c0_2] : memref<18x64xf32, #tpu.memory_space<vmem>>, vector<1x64xf32>
    tpu.vector_store %arg8[%c17, %c0_2], %0 {strides = array<i32>} : memref<18x64xf32, #tpu.memory_space<vmem>>, vector<1x64xf32>,
    %c0_3 = arith.constant 0 : index
    %c0_4 = arith.constant 0 : index
    %4 = vector.load %arg9[%c0_3, %c0_4] : memref<18x128xf32, #tpu.memory_space<vmem>>, vector<1x128xf32>
    tpu.vector_store %arg9[%c0_3, %c0_4], %1 {strides = array<i32>} : memref<18x128xf32, #tpu.memory_space<vmem>>, vector<1x128xf32>,
    %c17_5 = arith.constant 17 : index
    %c0_6 = arith.constant 0 : index
    %5 = vector.load %arg9[%c17_5, %c0_6] : memref<18x128xf32, #tpu.memory_space<vmem>>, vector<1x128xf32>
    tpu.vector_store %arg9[%c17_5, %c0_6], %1 {strides = array<i32>} : memref<18x128xf32, #tpu.memory_space<vmem>>, vector<1x128xf32>,
    %c0_7 = arith.constant 0 : index
    %c0_8 = arith.constant 0 : index
    %c0_9 = arith.constant 0 : index
    %6 = vector.load %arg1[%c0_7, %c0_8, %c0_9] : memref<1x16x64xf32, #tpu.memory_space<vmem>>, vector<1x16x64xf32>
    %7 = vector.shape_cast %6 : vector<1x16x64xf32> to vector<16x64xf32>
    %c1 = arith.constant 1 : index
    %c0_10 = arith.constant 0 : index
    %8 = vector.load %arg8[%c1, %c0_10] : memref<18x64xf32, #tpu.memory_space<vmem>>, vector<16x64xf32>
    tpu.vector_store %arg8[%c1, %c0_10], %7 {strides = array<i32>} : memref<18x64xf32, #tpu.memory_space<vmem>>, vector<16x64xf32>,
    %c0_11 = arith.constant 0 : index
    %c0_12 = arith.constant 0 : index
    %9 = vector.load %arg8[%c0_11, %c0_12] : memref<18x64xf32, #tpu.memory_space<vmem>>, vector<16x64xf32>
    %c0_13 = arith.constant 0 : index
    %c0_14 = arith.constant 0 : index
    %c0_15 = arith.constant 0 : index
    %10 = vector.load %arg2[%c0_13, %c0_14, %c0_15] : memref<3x64x128xf32, #tpu.memory_space<vmem>>, vector<1x64x128xf32>
    %11 = vector.shape_cast %10 : vector<1x64x128xf32> to vector<64x128xf32>
    %cst_16 = arith.constant dense<0.000000e+00> : vector<16x128xf32>
    %12 = tpu.matmul %9, %11, %cst_16 {dimension_numbers = #tpu.dot_dimension_numbers<[1], [0], [0], [1], [0, 0, 1, 1], [], []>} : vector<16x64xf32>, vector<64x128xf32>, vector<16x128xf32> -> vector<16x128xf32>
    %c1_17 = arith.constant 1 : index
    %c0_18 = arith.constant 0 : index
    %13 = vector.load %arg8[%c1_17, %c0_18] : memref<18x64xf32, #tpu.memory_space<vmem>>, vector<16x64xf32>
    %c1_19 = arith.constant 1 : index
    %c0_20 = arith.constant 0 : index
    %c0_21 = arith.constant 0 : index
    %14 = vector.load %arg2[%c1_19, %c0_20, %c0_21] : memref<3x64x128xf32, #tpu.memory_space<vmem>>, vector<1x64x128xf32>
    %15 = vector.shape_cast %14 : vector<1x64x128xf32> to vector<64x128xf32>
    %cst_22 = arith.constant dense<0.000000e+00> : vector<16x128xf32>
    %16 = tpu.matmul %13, %15, %cst_22 {dimension_numbers = #tpu.dot_dimension_numbers<[1], [0], [0], [1], [0, 0, 1, 1], [], []>} : vector<16x64xf32>, vector<64x128xf32>, vector<16x128xf32> -> vector<16x128xf32>
    %17 = arith.addf %12, %16 : vector<16x128xf32>
    %c2 = arith.constant 2 : index
    %c0_23 = arith.constant 0 : index
    %18 = vector.load %arg8[%c2, %c0_23] : memref<18x64xf32, #tpu.memory_space<vmem>>, vector<16x64xf32>
    %c2_24 = arith.constant 2 : index
    %c0_25 = arith.constant 0 : index
    %c0_26 = arith.constant 0 : index
    %19 = vector.load %arg2[%c2_24, %c0_25, %c0_26] : memref<3x64x128xf32, #tpu.memory_space<vmem>>, vector<1x64x128xf32>
    %20 = vector.shape_cast %19 : vector<1x64x128xf32> to vector<64x128xf32>
    %cst_27 = arith.constant dense<0.000000e+00> : vector<16x128xf32>
    %21 = tpu.matmul %18, %20, %cst_27 {dimension_numbers = #tpu.dot_dimension_numbers<[1], [0], [0], [1], [0, 0, 1, 1], [], []>} : vector<16x64xf32>, vector<64x128xf32>, vector<16x128xf32> -> vector<16x128xf32>
    %22 = arith.addf %17, %21 : vector<16x128xf32>
    %c0_28 = arith.constant 0 : index
    %c0_29 = arith.constant 0 : index
    %23 = vector.load %arg3[%c0_28, %c0_29] : memref<1x128xf32, #tpu.memory_space<vmem>>, vector<1x128xf32>
    %24 = vector.broadcast %23 : vector<1x128xf32> to vector<16x128xf32>
    %25 = arith.addf %22, %24 : vector<16x128xf32>
    %cst_30 = arith.constant 0.000000e+00 : f32
    %26 = vector.broadcast %cst_30 : f32 to vector<16x128xf32>
    %27 = arith.maximumf %25, %26 : vector<16x128xf32>
    %c1_31 = arith.constant 1 : index
    %c0_32 = arith.constant 0 : index
    %28 = vector.load %arg9[%c1_31, %c0_32] : memref<18x128xf32, #tpu.memory_space<vmem>>, vector<16x128xf32>
    tpu.vector_store %arg9[%c1_31, %c0_32], %27 {strides = array<i32>} : memref<18x128xf32, #tpu.memory_space<vmem>>, vector<16x128xf32>,
    %c1_33 = arith.constant 1 : index
    %c0_34 = arith.constant 0 : index
    %29 = vector.load %arg8[%c1_33, %c0_34] : memref<18x64xf32, #tpu.memory_space<vmem>>, vector<16x64xf32>
    %c0_35 = arith.constant 0 : index
    %c0_36 = arith.constant 0 : index
    %30 = vector.load %arg6[%c0_35, %c0_36] : memref<64x128xf32, #tpu.memory_space<vmem>>, vector<64x128xf32>
    %cst_37 = arith.constant dense<0.000000e+00> : vector<16x128xf32>
    %31 = tpu.matmul %29, %30, %cst_37 {dimension_numbers = #tpu.dot_dimension_numbers<[1], [0], [0], [1], [0, 0, 1, 1], [], []>} : vector<16x64xf32>, vector<64x128xf32>, vector<16x128xf32> -> vector<16x128xf32>
    %c0_38 = arith.constant 0 : index
    %c0_39 = arith.constant 0 : index
    %32 = vector.load %arg9[%c0_38, %c0_39] : memref<18x128xf32, #tpu.memory_space<vmem>>, vector<16x128xf32>
    %c0_40 = arith.constant 0 : index
    %c0_41 = arith.constant 0 : index
    %c0_42 = arith.constant 0 : index
    %33 = vector.load %arg4[%c0_40, %c0_41, %c0_42] : memref<3x128x128xf32, #tpu.memory_space<vmem>>, vector<1x128x128xf32>
    %34 = vector.shape_cast %33 : vector<1x128x128xf32> to vector<128x128xf32>
    %cst_43 = arith.constant dense<0.000000e+00> : vector<16x128xf32>
    %35 = tpu.matmul %32, %34, %cst_43 {dimension_numbers = #tpu.dot_dimension_numbers<[1], [0], [0], [1], [0, 0, 1, 1], [], []>} : vector<16x128xf32>, vector<128x128xf32>, vector<16x128xf32> -> vector<16x128xf32>
    %36 = arith.addf %31, %35 : vector<16x128xf32>
    %c1_44 = arith.constant 1 : index
    %c0_45 = arith.constant 0 : index
    %37 = vector.load %arg9[%c1_44, %c0_45] : memref<18x128xf32, #tpu.memory_space<vmem>>, vector<16x128xf32>
    %c1_46 = arith.constant 1 : index
    %c0_47 = arith.constant 0 : index
    %c0_48 = arith.constant 0 : index
    %38 = vector.load %arg4[%c1_46, %c0_47, %c0_48] : memref<3x128x128xf32, #tpu.memory_space<vmem>>, vector<1x128x128xf32>
    %39 = vector.shape_cast %38 : vector<1x128x128xf32> to vector<128x128xf32>
    %cst_49 = arith.constant dense<0.000000e+00> : vector<16x128xf32>
    %40 = tpu.matmul %37, %39, %cst_49 {dimension_numbers = #tpu.dot_dimension_numbers<[1], [0], [0], [1], [0, 0, 1, 1], [], []>} : vector<16x128xf32>, vector<128x128xf32>, vector<16x128xf32> -> vector<16x128xf32>
    %41 = arith.addf %36, %40 : vector<16x128xf32>
    %c2_50 = arith.constant 2 : index
    %c0_51 = arith.constant 0 : index
    %42 = vector.load %arg9[%c2_50, %c0_51] : memref<18x128xf32, #tpu.memory_space<vmem>>, vector<16x128xf32>
    %c2_52 = arith.constant 2 : index
    %c0_53 = arith.constant 0 : index
    %c0_54 = arith.constant 0 : index
    %43 = vector.load %arg4[%c2_52, %c0_53, %c0_54] : memref<3x128x128xf32, #tpu.memory_space<vmem>>, vector<1x128x128xf32>
    %44 = vector.shape_cast %43 : vector<1x128x128xf32> to vector<128x128xf32>
    %cst_55 = arith.constant dense<0.000000e+00> : vector<16x128xf32>
    %45 = tpu.matmul %42, %44, %cst_55 {dimension_numbers = #tpu.dot_dimension_numbers<[1], [0], [0], [1], [0, 0, 1, 1], [], []>} : vector<16x128xf32>, vector<128x128xf32>, vector<16x128xf32> -> vector<16x128xf32>
    %46 = arith.addf %41, %45 : vector<16x128xf32>
    %c0_56 = arith.constant 0 : index
    %c0_57 = arith.constant 0 : index
    %47 = vector.load %arg5[%c0_56, %c0_57] : memref<1x128xf32, #tpu.memory_space<vmem>>, vector<1x128xf32>
    %48 = vector.broadcast %47 : vector<1x128xf32> to vector<16x128xf32>
    %49 = arith.addf %46, %48 : vector<16x128xf32>
    %cst_58 = arith.constant 0.000000e+00 : f32
    %50 = vector.broadcast %cst_58 : f32 to vector<16x128xf32>
    %51 = arith.maximumf %49, %50 : vector<16x128xf32>
    %c0_59 = arith.constant 0 : index
    %c0_60 = arith.constant 0 : index
    %c0_61 = arith.constant 0 : index
    %52 = vector.load %arg7[%c0_59, %c0_60, %c0_61] : memref<1x16x128xf32, #tpu.memory_space<vmem>>, vector<1x16x128xf32>
    %53 = vector.shape_cast %52 : vector<1x16x128xf32> to vector<16x128xf32>
    %54 = vector.shape_cast %51 : vector<16x128xf32> to vector<1x16x128xf32>
    tpu.vector_store %arg7[%c0_59, %c0_60, %c0_61], %54 {strides = array<i32>} : memref<1x16x128xf32, #tpu.memory_space<vmem>>, vector<1x16x128xf32>,
    return
  }
  func.func @transform_0(%arg0: i32) -> (i32, i32, i32) {
    %c0_i32 = arith.constant 0 : i32
    %c0_i32_0 = arith.constant 0 : i32
    %c0_i32_1 = arith.constant 0 : i32
    return %arg0, %c0_i32, %c0_i32_0 : i32, i32, i32
  }
  func.func @transform_1(%arg0: i32) -> (i32, i32, i32) {
    %c0_i32 = arith.constant 0 : i32
    %c0_i32_0 = arith.constant 0 : i32
    %c0_i32_1 = arith.constant 0 : i32
    %c0_i32_2 = arith.constant 0 : i32
    return %c0_i32, %c0_i32_0, %c0_i32_1 : i32, i32, i32
  }
  func.func @transform_2(%arg0: i32) -> (i32, i32) {
    %c0_i32 = arith.constant 0 : i32
    %c0_i32_0 = arith.constant 0 : i32
    %c0_i32_1 = arith.constant 0 : i32
    return %c0_i32, %c0_i32_0 : i32, i32
  }
  func.func @transform_3(%arg0: i32) -> (i32, i32, i32) {
    %c0_i32 = arith.constant 0 : i32
    %c0_i32_0 = arith.constant 0 : i32
    %c0_i32_1 = arith.constant 0 : i32
    %c0_i32_2 = arith.constant 0 : i32
    return %c0_i32, %c0_i32_0, %c0_i32_1 : i32, i32, i32
  }
  func.func @transform_4(%arg0: i32) -> (i32, i32) {
    %c0_i32 = arith.constant 0 : i32
    %c0_i32_0 = arith.constant 0 : i32
    %c0_i32_1 = arith.constant 0 : i32
    return %c0_i32, %c0_i32_0 : i32, i32
  }
  func.func @transform_5(%arg0: i32) -> (i32, i32) {
    %c0_i32 = arith.constant 0 : i32
    %c0_i32_0 = arith.constant 0 : i32
    %c0_i32_1 = arith.constant 0 : i32
    return %c0_i32, %c0_i32_0 : i32, i32
  }
  func.func @transform_6(%arg0: i32) -> (i32, i32, i32) {
    %c0_i32 = arith.constant 0 : i32
    %c0_i32_0 = arith.constant 0 : i32
    %c0_i32_1 = arith.constant 0 : i32
    return %arg0, %c0_i32, %c0_i32_0 : i32, i32, i32
  }
}

</mosaic_0001>

<llo_original>
// kernel: tpu_custom_call.1
$region0: #{tpu_custom_call.1}
  #allocation0 [shape = 'u32[]', space=smem, size = 0x4, offset = 0x4, fixed_abs, tag = 'smem constant byte address 0x4 - core index']
  #allocation1 [shape = 'u32[144,128]{1,0:T(1,128)}', space=vmem, size = 0x12000, scoped, tag = 'internal scratch']
  #allocation2 [shape = 'f32[18,64]{1,0:T(8,128)}', space=vmem, size = 0x3000, scoped, tag = 'scratch operand']
  #allocation3 [shape = 'f32[18,128]{1,0:T(8,128)}', space=vmem, size = 0x3000, scoped, tag = 'scratch operand']
  %s0 = inlined_call_operand.hbm [shape: f32[2,16,64], index: 0, kind: input, shape index: {}]
  %s1 = inlined_call_operand.hbm [shape: f32[3,64,128], index: 1, kind: input, shape index: {}]
  %s2 = inlined_call_operand.vmem [shape: f32[1,128], index: 2, kind: input, shape index: {}]
  %s3 = inlined_call_operand.hbm [shape: f32[3,128,128], index: 3, kind: input, shape index: {}]
  %s4 = inlined_call_operand.vmem [shape: f32[1,128], index: 4, kind: input, shape index: {}]
  %s5 = inlined_call_operand.hbm [shape: f32[64,128], index: 5, kind: input, shape index: {}]
  %s6 = inlined_call_operand.hbm [shape: f32[2,16,128], index: 6, kind: output, shape index: {}]
  %s7 = sld [smem:[#allocation0]]
  $region73: #{tpu_custom_call.1} parent=0
    _
  %s9 = ssub.s32 1, %s7
  %s10 = scalar_select 0, %s9, %s7
  $region1: #{tpu_custom_call.1} parent=0
    #allocation4 [shape = 'u8[16384]{0}', space=vmem, size = 0x4000, scoped, tag = 'input window, operand 0']
    #allocation5 [shape = 's32[2]{0}', space=sflag, size = 0x8, scoped, tag = 'scoped memory for tpu_custom_call.1']
    #allocation6 [shape = 's32[2]{0}', space=sflag, size = 0x8, scoped, tag = 'scoped memory for tpu_custom_call.1']
    #allocation7 [shape = 'u8[98304]{0}', space=vmem, size = 0x18000, scoped, tag = 'input window, operand 1, single buffered']
    #allocation8 [shape = 's32[1]{0}', space=sflag, size = 0x4, scoped, tag = 'scoped memory for tpu_custom_call.1']
    #allocation9 [shape = 'u8[196608]{0}', space=vmem, size = 0x30000, scoped, tag = 'input window, operand 3, single buffered']
    #allocation10 [shape = 'u8[32768]{0}', space=vmem, size = 0x8000, scoped, tag = 'input window, operand 5, single buffered']
    #allocation11 [shape = 's32[1]{0}', space=sflag, size = 0x4, scoped, tag = 'scoped memory for tpu_custom_call.1']
    #allocation12 [shape = 'u8[16384]{0}', space=vmem, size = 0x4000, scoped, tag = 'output window, operand 0']
    %11 = vsyncpa [#allocation5], 0
    %s12 = scalar_lea.sflag [#allocation5], 1
    %13 = vsyncpa %s12, 0
    %14 = vsyncpa [#allocation8], 0
    %15 = vsyncpa [#allocation11], 0
    %16 = vsyncpa [#allocation6], 0
    %s17 = scalar_lea.sflag [#allocation6], 1
    %18 = vsyncpa %s17, 0
    loop: start=0, step=1, limit=4
    $region2: #{tpu_custom_call.1} parent=1 // loop_pre_header
      _
    $region3: #{tpu_custom_call.1} parent=1 // loop_header
      %s20 = sphi 0, %s24
      %p21 = scmp.ge.s32.totalorder %s20, 4
      %s30 = sphi 0, %s32
      %s33 = sphi 0, %s30
      %s34 = sphi 0, %s33
      %s50 = sphi 0, %s34
      %s54 = sphi 0, %s54
      %s56 = sphi 0, %s54
      %s57 = sphi 0, %s56
      %s71 = sphi 0, %s57
      %s75 = sphi 0, %s75
      %s77 = sphi 0, %s75
      %s78 = sphi 0, %s77
      %s92 = sphi 0, %s78
      %s96 = sphi 0, %s96
      %s98 = sphi 0, %s96
      %s99 = sphi 0, %s98
      %s113 = sphi 0, %s99
      %s117 = sphi 0, %s117
      %s119 = sphi 0, %s117
      %s120 = sphi 0, %s119
      %s134 = sphi 0, %s120
      %s138 = sphi 0, %s138
      %s140 = sphi 0, %s138
      %s141 = sphi 0, %s140
      %s155 = sphi 0, %s141
      %s161 = sphi 0, %s163
      %s164 = sphi 0, %s161
      %s165 = sphi 0, %s164
      %s181 = sphi 0, %s165
    $region4: #{tpu_custom_call.1} parent=1 // loop_header_branch
      %23 = sbr.rel (%p21) target = $region8
    $region5: #{tpu_custom_call.1} parent=1 // loop_body
      %s25 = ssub.s32 %s20, 1
      %s26 = ssub.s32 %s20, 2
      %s27 = sadd.s32 %s20, 1
      %s28 = ssub.s32 %s20, %s27
      %p29 = scmp.eq.s32.totalorder %s28, 0
      %s31 = sadd.s32 %s30, 1
      %s32 = scalar_select %p29, %s30, %s31
      %p35 = pneg %p29
      %p36 = scmp.eq.s32.totalorder %s20, 1
      %p37 = por %p35, %p36
      %p38 = scmp.ne.s32.totalorder %s30, %s33
      %p39 = scmp.eq.s32.totalorder %s20, 0
      %p40 = por %p38, %p39
      %p41 = scmp.ne.s32.totalorder %s30, %s33
      %p42 = scmp.eq.s32.totalorder %s25, 1
      %p43 = por %p41, %p42
      %p44 = scmp.ne.s32.totalorder %s33, %s34
      %p45 = scmp.eq.s32.totalorder %s25, 0
      %p46 = por %p44, %p45
      %p47 = scmp.ne.s32.totalorder %s33, %s34
      %p48 = scmp.eq.s32.totalorder %s26, 1
      %p49 = por %p47, %p48
      %p51 = scmp.ne.s32.totalorder %s34, %s50
      %p52 = scmp.eq.s32.totalorder %s26, 0
      %p53 = por %p51, %p52
      %s55 = sadd.s32 %s54, 1
      %p58 = scmp.eq.s32.totalorder %s20, 1
      %p59 = scmp.ne.s32.totalorder %s54, %s56
      %p60 = scmp.eq.s32.totalorder %s20, 0
      %p61 = por %p59, %p60
      %p62 = scmp.ne.s32.totalorder %s54, %s56
      %p63 = scmp.eq.s32.totalorder %s25, 1
      %p64 = por %p62, %p63
      %p65 = scmp.ne.s32.totalorder %s56, %s57
      %p66 = scmp.eq.s32.totalorder %s25, 0
      %p67 = por %p65, %p66
      %p68 = scmp.ne.s32.totalorder %s56, %s57
      %p69 = scmp.eq.s32.totalorder %s26, 1
      %p70 = por %p68, %p69
      %p72 = scmp.ne.s32.totalorder %s57, %s71
      %p73 = scmp.eq.s32.totalorder %s26, 0
      %p74 = por %p72, %p73
      %s76 = sadd.s32 %s75, 1
      %p79 = scmp.eq.s32.totalorder %s20, 1
      %p80 = scmp.ne.s32.totalorder %s75, %s77
      %p81 = scmp.eq.s32.totalorder %s20, 0
      %p82 = por %p80, %p81
      %p83 = scmp.ne.s32.totalorder %s75, %s77
      %p84 = scmp.eq.s32.totalorder %s25, 1
      %p85 = por %p83, %p84
      %p86 = scmp.ne.s32.totalorder %s77, %s78
      %p87 = scmp.eq.s32.totalorder %s25, 0
      %p88 = por %p86, %p87
      %p89 = scmp.ne.s32.totalorder %s77, %s78
      %p90 = scmp.eq.s32.totalorder %s26, 1
      %p91 = por %p89, %p90
      %p93 = scmp.ne.s32.totalorder %s78, %s92
      %p94 = scmp.eq.s32.totalorder %s26, 0
      %p95 = por %p93, %p94
      %s97 = sadd.s32 %s96, 1
      %p100 = scmp.eq.s32.totalorder %s20, 1
      %p101 = scmp.ne.s32.totalorder %s96, %s98
      %p102 = scmp.eq.s32.totalorder %s20, 0
      %p103 = por %p101, %p102
      %p104 = scmp.ne.s32.totalorder %s96, %s98
      %p105 = scmp.eq.s32.totalorder %s25, 1
      %p106 = por %p104, %p105
      %p107 = scmp.ne.s32.totalorder %s98, %s99
      %p108 = scmp.eq.s32.totalorder %s25, 0
      %p109 = por %p107, %p108
      %p110 = scmp.ne.s32.totalorder %s98, %s99
      %p111 = scmp.eq.s32.totalorder %s26, 1
      %p112 = por %p110, %p111
      %p114 = scmp.ne.s32.totalorder %s99, %s113
      %p115 = scmp.eq.s32.totalorder %s26, 0
      %p116 = por %p114, %p115
      %s118 = sadd.s32 %s117, 1
      %p121 = scmp.eq.s32.totalorder %s20, 1
      %p122 = scmp.ne.s32.totalorder %s117, %s119
      %p123 = scmp.eq.s32.totalorder %s20, 0
      %p124 = por %p122, %p123
      %p125 = scmp.ne.s32.totalorder %s117, %s119
      %p126 = scmp.eq.s32.totalorder %s25, 1
      %p127 = por %p125, %p126
      %p128 = scmp.ne.s32.totalorder %s119, %s120
      %p129 = scmp.eq.s32.totalorder %s25, 0
      %p130 = por %p128, %p129
      %p131 = scmp.ne.s32.totalorder %s119, %s120
      %p132 = scmp.eq.s32.totalorder %s26, 1
      %p133 = por %p131, %p132
      %p135 = scmp.ne.s32.totalorder %s120, %s134
      %p136 = scmp.eq.s32.totalorder %s26, 0
      %p137 = por %p135, %p136
      %s139 = sadd.s32 %s138, 1
      %p142 = scmp.eq.s32.totalorder %s20, 1
      %p143 = scmp.ne.s32.totalorder %s138, %s140
      %p144 = scmp.eq.s32.totalorder %s20, 0
      %p145 = por %p143, %p144
      %p146 = scmp.ne.s32.totalorder %s138, %s140
      %p147 = scmp.eq.s32.totalorder %s25, 1
      %p148 = por %p146, %p147
      %p149 = scmp.ne.s32.totalorder %s140, %s141
      %p150 = scmp.eq.s32.totalorder %s25, 0
      %p151 = por %p149, %p150
      %p152 = scmp.ne.s32.totalorder %s140, %s141
      %p153 = scmp.eq.s32.totalorder %s26, 1
      %p154 = por %p152, %p153
      %p156 = scmp.ne.s32.totalorder %s141, %s155
      %p157 = scmp.eq.s32.totalorder %s26, 0
      %p158 = por %p156, %p157
      %s159 = ssub.s32 %s20, %s27
      %p160 = scmp.eq.s32.totalorder %s159, 0
      %s162 = sadd.s32 %s161, 1
      %s163 = scalar_select %p160, %s161, %s162
      %p166 = pneg %p160
      %p167 = scmp.eq.s32.totalorder %s20, 1
      %p168 = por %p166, %p167
      %p169 = scmp.ne.s32.totalorder %s161, %s164
      %p170 = scmp.eq.s32.totalorder %s20, 0
      %p171 = por %p169, %p170
      %p172 = scmp.ne.s32.totalorder %s161, %s164
      %p173 = scmp.eq.s32.totalorder %s25, 1
      %p174 = por %p172, %p173
      %p175 = scmp.ne.s32.totalorder %s164, %s165
      %p176 = scmp.eq.s32.totalorder %s25, 0
      %p177 = por %p175, %p176
      %p178 = scmp.ne.s32.totalorder %s164, %s165
      %p179 = scmp.eq.s32.totalorder %s26, 1
      %p180 = por %p178, %p179
      %p182 = scmp.ne.s32.totalorder %s165, %s181
      %p183 = scmp.eq.s32.totalorder %s26, 0
      %p184 = por %p182, %p183
      %p185 = scmp.le.s32.totalorder 1, %s20
      %p186 = scmp.lt.s32.totalorder %s20, 3
      %p187 = pnand %p185, %p186
      %p188 = pneg %p187
      // Predicated region
      $region9: #{tpu_custom_call.1} parent=5 // pred_check
        _
      $region10: #{tpu_custom_call.1} parent=5 // pred_check_branch
        %190 = sbr.rel (%p187) target = $region12
      $region11: #{tpu_custom_call.1} parent=5 // pred_region
        %s191 = ssub.s32 %s20, 1
        // Predicated region
        $region13: #{tpu_custom_call.1} parent=11 // pred_check
          %p192 = pneg %p67
        $region14: #{tpu_custom_call.1} parent=11 // pred_check_branch
          %194 = sbr.rel (%p192) target = $region16
        $region15: #{tpu_custom_call.1} parent=11 // pred_region
          %s196 = ssub.s32 3072, 3072
          %197 = vsyncadd [#allocation8], %s196
          %s198 = sshll.u32 [#allocation7], 4
          %s199 = int_to_ptr.vmem [resolvable:$true] %s198
          %204 = dma.hbm_to_vmem [thread:$0]  %s1, 3072, %s199, [#allocation8], 128, 128, 8
        $region16: #{tpu_custom_call.1} parent=11 // pred_fallthru
          _
        // Predicated region
        $region17: #{tpu_custom_call.1} parent=11 // pred_check
          %p205 = pneg %p88
        $region18: #{tpu_custom_call.1} parent=11 // pred_check_branch
          %207 = sbr.rel (%p205) target = $region20
        $region19: #{tpu_custom_call.1} parent=11 // pred_region
          _
        $region20: #{tpu_custom_call.1} parent=11 // pred_fallthru
          _
        // Predicated region
        $region21: #{tpu_custom_call.1} parent=11 // pred_check
          %p208 = pneg %p109
        $region22: #{tpu_custom_call.1} parent=11 // pred_check_branch
          %210 = sbr.rel (%p208) target = $region24
        $region23: #{tpu_custom_call.1} parent=11 // pred_region
          %s212 = ssub.s32 6144, 6144
          %213 = vsyncadd [#allocation8], %s212
          %s214 = sshll.u32 [#allocation9], 4
          %s215 = int_to_ptr.vmem [resolvable:$true] %s214
          %220 = dma.hbm_to_vmem [thread:$0]  %s3, 6144, %s215, [#allocation8], 128, 128, 8
        $region24: #{tpu_custom_call.1} parent=11 // pred_fallthru
          _
        // Predicated region
        $region25: #{tpu_custom_call.1} parent=11 // pred_check
          %p221 = pneg %p130
        $region26: #{tpu_custom_call.1} parent=11 // pred_check_branch
          %223 = sbr.rel (%p221) target = $region28
        $region27: #{tpu_custom_call.1} parent=11 // pred_region
          _
        $region28: #{tpu_custom_call.1} parent=11 // pred_fallthru
          _
        // Predicated region
        $region29: #{tpu_custom_call.1} parent=11 // pred_check
          %p224 = pneg %p151
        $region30: #{tpu_custom_call.1} parent=11 // pred_check_branch
          %226 = sbr.rel (%p224) target = $region32
        $region31: #{tpu_custom_call.1} parent=11 // pred_region
          %s228 = ssub.s32 1024, 1024
          %229 = vsyncadd [#allocation11], %s228
          %s230 = sshll.u32 [#allocation10], 4
          %s231 = int_to_ptr.vmem [resolvable:$true] %s230
          %236 = dma.hbm_to_vmem [thread:$0]  %s5, 1024, %s231, [#allocation11], 128, 128, 8
        $region32: #{tpu_custom_call.1} parent=11 // pred_fallthru
          _
      $region12: #{tpu_custom_call.1} parent=5 // pred_fallthru
        _
      %p237 = scmp.lt.s32.totalorder %s20, 2
      // Predicated region
      $region33: #{tpu_custom_call.1} parent=5 // pred_check
        %p238 = pneg %p237
      $region34: #{tpu_custom_call.1} parent=5 // pred_check_branch
        %240 = sbr.rel (%p238) target = $region36
      $region35: #{tpu_custom_call.1} parent=5 // pred_region
        // Predicated region
        $region37: #{tpu_custom_call.1} parent=35 // pred_check
          %p241 = pneg %p40
        $region38: #{tpu_custom_call.1} parent=35 // pred_check_branch
          %243 = sbr.rel (%p241) target = $region40
        $region39: #{tpu_custom_call.1} parent=35 // pred_region
          %s244 = sand.u32 %s30, 1
          %s245 = scalar_lea.sflag [#allocation5], %s244
          %s246 = sand.u32 %s30, 1
          %s247 = smul.addr %s246, 16
          %s248 = scalar_lea.vmem [#allocation4], %s247
          %s250 = ssub.s32 256, 256
          %251 = vsyncadd %s245, %s250
          %s252 = smul.addr %s20, 2
          %s253 = smul.addr %s252, 128
          %s254 = scalar_lea.hbm %s0, %s253
          %s255 = sshll.u32 %s248, 4
          %s256 = int_to_ptr.vmem [resolvable:$true] %s255
          %261 = dma.hbm_to_vmem [thread:$0]  %s254, 256, %s256, %s245, 128, 128, 8
        $region40: #{tpu_custom_call.1} parent=35 // pred_fallthru
          _
      $region36: #{tpu_custom_call.1} parent=5 // pred_fallthru
        _
      %p262 = scmp.le.s32.totalorder 1, %s20
      %p263 = scmp.lt.s32.totalorder %s20, 3
      %p264 = pnand %p262, %p263
      %p265 = pneg %p264
      // Predicated region
      $region41: #{tpu_custom_call.1} parent=5 // pred_check
        _
      $region42: #{tpu_custom_call.1} parent=5 // pred_check_branch
        %267 = sbr.rel (%p264) target = $region44
      $region43: #{tpu_custom_call.1} parent=5 // pred_region
        %s268 = ssub.s32 %s20, 1
        %s269 = sand.u32 %s33, 1
        %s270 = scalar_lea.sflag [#allocation5], %s269
        %s271 = sand.u32 %s33, 1
        %s272 = smul.addr %s271, 16
        %s273 = scalar_lea.vmem [#allocation4], %s272
        // Predicated region
        $region45: #{tpu_custom_call.1} parent=43 // pred_check
          %p274 = pneg %p46
        $region46: #{tpu_custom_call.1} parent=43 // pred_check_branch
          %276 = sbr.rel (%p274) target = $region48
        $region47: #{tpu_custom_call.1} parent=43 // pred_region
          %277 = dma.done %s270, 256
        $region48: #{tpu_custom_call.1} parent=43 // pred_fallthru
          _
        // Predicated region
        $region49: #{tpu_custom_call.1} parent=43 // pred_check
          %p278 = pneg %p67
        $region50: #{tpu_custom_call.1} parent=43 // pred_check_branch
          %280 = sbr.rel (%p278) target = $region52
        $region51: #{tpu_custom_call.1} parent=43 // pred_region
          %281 = dma.done [#allocation8], 3072
        $region52: #{tpu_custom_call.1} parent=43 // pred_fallthru
          _
        // Predicated region
        $region53: #{tpu_custom_call.1} parent=43 // pred_check
          %p282 = pneg %p109
        $region54: #{tpu_custom_call.1} parent=43 // pred_check_branch
          %284 = sbr.rel (%p282) target = $region56
        $region55: #{tpu_custom_call.1} parent=43 // pred_region
          %285 = dma.done [#allocation8], 6144
        $region56: #{tpu_custom_call.1} parent=43 // pred_fallthru
          _
        // Predicated region
        $region57: #{tpu_custom_call.1} parent=43 // pred_check
          %p286 = pneg %p151
        $region58: #{tpu_custom_call.1} parent=43 // pred_check_branch
          %288 = sbr.rel (%p286) target = $region60
        $region59: #{tpu_custom_call.1} parent=43 // pred_region
          %289 = dma.done [#allocation11], 1024
        $region60: #{tpu_custom_call.1} parent=43 // pred_fallthru
          _
        %s290 = sand.u32 %s33, 1
        %s291 = scalar_lea.sflag [#allocation5], %s290
        %s292 = sand.u32 %s33, 1
        %s293 = smul.addr %s292, 16
        %s294 = scalar_lea.vmem [#allocation4], %s293
        %p295 = pneg %p46
        %p296 = pneg %p43
        %p297 = pneg %p67
        %p298 = pneg %p64
        %p299 = pneg %p88
        %p300 = pneg %p85
        %p301 = pneg %p109
        %p302 = pneg %p106
        %p303 = pneg %p130
        %p304 = pneg %p127
        %p305 = pneg %p151
        %p306 = pneg %p148
        %p307 = pneg %p177
        %p308 = pneg %p174
        %s309 = sand.u32 %s164, 1
        %s310 = scalar_lea.sflag [#allocation6], %s309
        %s311 = sand.u32 %s164, 1
        %s312 = smul.addr %s311, 16
        %s313 = scalar_lea.vmem [#allocation12], %s312
        %vm314 = vcmask 516096
        %315 = vst.msk [vmem:[#allocation2] sm:$0x1] %vm314, 0.0
        %316 = vst.msk [vmem:[#allocation2 + $0x11] sm:$0x1] %vm314, 0.0
        %317 = vst [vmem:[#allocation3] sm:$0x1] 0.0
        %318 = vst [vmem:[#allocation3 + $0x11] sm:$0x1] 0.0
        %v319 = vld [vmem:[%s273] sm:$0xff]
        %v320 = vld [vmem:[%s273 + $0x8] sm:$0xff]
        %vm321 = vcmask 523264
        %322 = vst.msk [vmem:[#allocation2 + $0x1] sm:$0xff] %vm321, %v319
        %323 = vst.msk [vmem:[#allocation2 + $0x9] sm:$0xff] %vm321, %v320
        %v324 = vld [vmem:[#allocation2] sm:$0xff]
        %v325 = vld [vmem:[#allocation2 + $0x8] sm:$0xff]
        %v326 = vld [vmem:[#allocation7] sm:$0xff]
        %v327 = vld [vmem:[#allocation7 + $0x8] sm:$0xff]
        %v328 = vld [vmem:[#allocation7 + $0x10] sm:$0xff]
        %v329 = vld [vmem:[#allocation7 + $0x18] sm:$0xff]
        %v330 = vld [vmem:[#allocation7 + $0x20] sm:$0xff]
        %v331 = vld [vmem:[#allocation7 + $0x28] sm:$0xff]
        %v332 = vld [vmem:[#allocation7 + $0x30] sm:$0xff]
        %v333 = vld [vmem:[#allocation7 + $0x38] sm:$0xff]
        %v334 = vld [vmem:[#allocation2 + $0x1] sm:$0xff]
        %v335 = vld [vmem:[#allocation2 + $0x9] sm:$0xff]
        %s336 = scalar_lea.vmem [#allocation7], 64
        %v337 = vld [vmem:[%s336] sm:$0xff]
        %v338 = vld [vmem:[%s336 + $0x8] sm:$0xff]
        %v339 = vld [vmem:[%s336 + $0x10] sm:$0xff]
        %v340 = vld [vmem:[%s336 + $0x18] sm:$0xff]
        %v341 = vld [vmem:[%s336 + $0x20] sm:$0xff]
        %v342 = vld [vmem:[%s336 + $0x28] sm:$0xff]
        %v343 = vld [vmem:[%s336 + $0x30] sm:$0xff]
        %v344 = vld [vmem:[%s336 + $0x38] sm:$0xff]
        %v346 = vsel %vm321, %v334, 0
        %v349 = vsel %vm321, %v335, 0
        %351 = vmatprep.subr.mxu0 0.0
        %352 = vmatpush1.msra.mxu0 0.0
        %353 = vmatprep.subr.mxu0 0.0
        %354 = vmatpush1.msra.mxu0 0.0
        %355 = vmatprep.subr.mxu0 0.0
        %356 = vmatpush1.msra.mxu0 0.0
        %357 = vmatprep.subr.mxu0 0.0
        %358 = vmatpush1.msra.mxu0 0.0
        %359 = vmatprep.subr.mxu0 0.0
        %360 = vmatpush1.msra.mxu0 0.0
        %361 = vmatprep.subr.mxu0 0.0
        %362 = vmatpush1.msra.mxu0 0.0
        %363 = vmatprep.subr.mxu0 0.0
        %364 = vmatpush1.msra.mxu0 0.0
        %365 = vmatprep.subr.mxu0 0.0
        %366 = vmatpush1.msra.mxu0 0.0
        %367 = vmatprep.subr.mxu0 0.0
        %368 = vmatpush1.msra.mxu0 %v344
        %369 = vmatprep.subr.mxu0 0.0
        %370 = vmatpush1.msra.mxu0 %v343
        %371 = vmatprep.subr.mxu0 0.0
        %372 = vmatpush1.msra.mxu0 %v342
        %373 = vmatprep.subr.mxu0 0.0
        %374 = vmatpush1.msra.mxu0 %v341
        %375 = vmatprep.subr.mxu0 0.0
        %376 = vmatpush1.msra.mxu0 %v340
        %377 = vmatprep.subr.mxu0 0.0
        %378 = vmatpush1.msra.mxu0 %v339
        %379 = vmatprep.subr.mxu0 0.0
        %380 = vmatpush1.msra.mxu0 %v338
        %381 = vmatprep.subr.mxu0 0.0
        %382 = vmatpush1.msra.mxu0 %v337
        %383 = vmatprep.subr.mxu0 0.0
        %384 = vmatpush2.msra.mxu0 0.0
        %385 = vmatprep.subr.mxu0 0.0
        %386 = vmatpush2.msra.mxu0 0.0
        %387 = vmatprep.subr.mxu0 0.0
        %388 = vmatpush2.msra.mxu0 0.0
        %389 = vmatprep.subr.mxu0 0.0
        %390 = vmatpush2.msra.mxu0 0.0
        %391 = vmatprep.subr.mxu0 0.0
        %392 = vmatpush2.msra.mxu0 0.0
        %393 = vmatprep.subr.mxu0 0.0
        %394 = vmatpush2.msra.mxu0 0.0
        %395 = vmatprep.subr.mxu0 0.0
        %396 = vmatpush2.msra.mxu0 0.0
        %397 = vmatprep.subr.mxu0 0.0
        %398 = vmatpush2.msra.mxu0 0.0
        %399 = vmatprep.subr.mxu0 0.0
        %400 = vmatpush2.msra.mxu0 0.0
        %401 = vmatprep.subr.mxu0 0.0
        %402 = vmatpush2.msra.mxu0 0.0
        %403 = vmatprep.subr.mxu0 0.0
        %404 = vmatpush2.msra.mxu0 0.0
        %405 = vmatprep.subr.mxu0 0.0
        %406 = vmatpush2.msra.mxu0 0.0
        %407 = vmatprep.subr.mxu0 0.0
        %408 = vmatpush2.msra.mxu0 0.0
        %409 = vmatprep.subr.mxu0 0.0
        %410 = vmatpush2.msra.mxu0 0.0
        %411 = vmatprep.subr.mxu0 0.0
        %412 = vmatpush2.msra.mxu0 0.0
        %413 = vmatprep.subr.mxu0 0.0
        %414 = vmatpush2.msra.mxu0 0.0
        %415 = vmatprep.mubr.f32.mxu0 0.0
        %416 = vmatmul.mubr.f32.gmra.mxu0 %v346
        %v417 = vpop.f32.mrf.mxu0
        %v418 = vadd.f32 0.0, %v417
        %v419 = vpop.f32.mrf.mxu0
        %420 = vmatprep.mubr.f32.mxu0 0.0
        %421 = vmatmul.mubr.f32.gmra.mxu0 %v349
        %v422 = vpop.f32.mrf.mxu0
        %v423 = vadd.f32 0.0, %v422
        %v424 = vpop.f32.mrf.mxu0
        %425 = vdwg.mxu0
        %v427 = vsel %vm321, %v324, 0
        %v430 = vsel %vm321, %v325, 0
        %432 = vmatprep.subr.mxu0 0.0
        %433 = vmatpush1.msra.mxu0 0.0
        %434 = vmatprep.subr.mxu0 0.0
        %435 = vmatpush1.msra.mxu0 0.0
        %436 = vmatprep.subr.mxu0 0.0
        %437 = vmatpush1.msra.mxu0 0.0
        %438 = vmatprep.subr.mxu0 0.0
        %439 = vmatpush1.msra.mxu0 0.0
        %440 = vmatprep.subr.mxu0 0.0
        %441 = vmatpush1.msra.mxu0 0.0
        %442 = vmatprep.subr.mxu0 0.0
        %443 = vmatpush1.msra.mxu0 0.0
        %444 = vmatprep.subr.mxu0 0.0
        %445 = vmatpush1.msra.mxu0 0.0
        %446 = vmatprep.subr.mxu0 0.0
        %447 = vmatpush1.msra.mxu0 0.0
        %448 = vmatprep.subr.mxu0 0.0
        %449 = vmatpush1.msra.mxu0 %v333
        %450 = vmatprep.subr.mxu0 0.0
        %451 = vmatpush1.msra.mxu0 %v332
        %452 = vmatprep.subr.mxu0 0.0
        %453 = vmatpush1.msra.mxu0 %v331
        %454 = vmatprep.subr.mxu0 0.0
        %455 = vmatpush1.msra.mxu0 %v330
        %456 = vmatprep.subr.mxu0 0.0
        %457 = vmatpush1.msra.mxu0 %v329
        %458 = vmatprep.subr.mxu0 0.0
        %459 = vmatpush1.msra.mxu0 %v328
        %460 = vmatprep.subr.mxu0 0.0
        %461 = vmatpush1.msra.mxu0 %v327
        %462 = vmatprep.subr.mxu0 0.0
        %463 = vmatpush1.msra.mxu0 %v326
        %464 = vmatprep.subr.mxu0 0.0
        %465 = vmatpush2.msra.mxu0 0.0
        %466 = vmatprep.subr.mxu0 0.0
        %467 = vmatpush2.msra.mxu0 0.0
        %468 = vmatprep.subr.mxu0 0.0
        %469 = vmatpush2.msra.mxu0 0.0
        %470 = vmatprep.subr.mxu0 0.0
        %471 = vmatpush2.msra.mxu0 0.0
        %472 = vmatprep.subr.mxu0 0.0
        %473 = vmatpush2.msra.mxu0 0.0
        %474 = vmatprep.subr.mxu0 0.0
        %475 = vmatpush2.msra.mxu0 0.0
        %476 = vmatprep.subr.mxu0 0.0
        %477 = vmatpush2.msra.mxu0 0.0
        %478 = vmatprep.subr.mxu0 0.0
        %479 = vmatpush2.msra.mxu0 0.0
        %480 = vmatprep.subr.mxu0 0.0
        %481 = vmatpush2.msra.mxu0 0.0
        %482 = vmatprep.subr.mxu0 0.0
        %483 = vmatpush2.msra.mxu0 0.0
        %484 = vmatprep.subr.mxu0 0.0
        %485 = vmatpush2.msra.mxu0 0.0
        %486 = vmatprep.subr.mxu0 0.0
        %487 = vmatpush2.msra.mxu0 0.0
        %488 = vmatprep.subr.mxu0 0.0
        %489 = vmatpush2.msra.mxu0 0.0
        %490 = vmatprep.subr.mxu0 0.0
        %491 = vmatpush2.msra.mxu0 0.0
        %492 = vmatprep.subr.mxu0 0.0
        %493 = vmatpush2.msra.mxu0 0.0
        %494 = vmatprep.subr.mxu0 0.0
        %495 = vmatpush2.msra.mxu0 0.0
        %496 = vmatprep.mubr.f32.mxu0 0.0
        %497 = vmatmul.mubr.f32.gmra.mxu0 %v427
        %v498 = vpop.f32.mrf.mxu0
        %v499 = vadd.f32 %v418, %v498
        %v500 = vpop.f32.mrf.mxu0
        %501 = vmatprep.mubr.f32.mxu0 0.0
        %502 = vmatmul.mubr.f32.gmra.mxu0 %v430
        %v503 = vpop.f32.mrf.mxu0
        %v504 = vadd.f32 %v423, %v503
        %v505 = vpop.f32.mrf.mxu0
        %506 = vdwg.mxu0
        %v507 = vld [vmem:[#allocation2 + $0x2] sm:$0xff]
        %v508 = vld [vmem:[#allocation2 + $0xa] sm:$0xff]
        %s509 = scalar_lea.vmem [#allocation7], 128
        %v510 = vld [vmem:[%s509] sm:$0xff]
        %v511 = vld [vmem:[%s509 + $0x8] sm:$0xff]
        %v512 = vld [vmem:[%s509 + $0x10] sm:$0xff]
        %v513 = vld [vmem:[%s509 + $0x18] sm:$0xff]
        %v514 = vld [vmem:[%s509 + $0x20] sm:$0xff]
        %v515 = vld [vmem:[%s509 + $0x28] sm:$0xff]
        %v516 = vld [vmem:[%s509 + $0x30] sm:$0xff]
        %v517 = vld [vmem:[%s509 + $0x38] sm:$0xff]
        %v519 = vsel %vm321, %v507, 0
        %v522 = vsel %vm321, %v508, 0
        %524 = vmatprep.subr.mxu0 0.0
        %525 = vmatpush1.msra.mxu0 0.0
        %526 = vmatprep.subr.mxu0 0.0
        %527 = vmatpush1.msra.mxu0 0.0
        %528 = vmatprep.subr.mxu0 0.0
        %529 = vmatpush1.msra.mxu0 0.0
        %530 = vmatprep.subr.mxu0 0.0
        %531 = vmatpush1.msra.mxu0 0.0
        %532 = vmatprep.subr.mxu0 0.0
        %533 = vmatpush1.msra.mxu0 0.0
        %534 = vmatprep.subr.mxu0 0.0
        %535 = vmatpush1.msra.mxu0 0.0
        %536 = vmatprep.subr.mxu0 0.0
        %537 = vmatpush1.msra.mxu0 0.0
        %538 = vmatprep.subr.mxu0 0.0
        %539 = vmatpush1.msra.mxu0 0.0
        %540 = vmatprep.subr.mxu0 0.0
        %541 = vmatpush1.msra.mxu0 %v517
        %542 = vmatprep.subr.mxu0 0.0
        %543 = vmatpush1.msra.mxu0 %v516
        %544 = vmatprep.subr.mxu0 0.0
        %545 = vmatpush1.msra.mxu0 %v515
        %546 = vmatprep.subr.mxu0 0.0
        %547 = vmatpush1.msra.mxu0 %v514
        %548 = vmatprep.subr.mxu0 0.0
        %549 = vmatpush1.msra.mxu0 %v513
        %550 = vmatprep.subr.mxu0 0.0
        %551 = vmatpush1.msra.mxu0 %v512
        %552 = vmatprep.subr.mxu0 0.0
        %553 = vmatpush1.msra.mxu0 %v511
        %554 = vmatprep.subr.mxu0 0.0
        %555 = vmatpush1.msra.mxu0 %v510
        %556 = vmatprep.subr.mxu0 0.0
        %557 = vmatpush2.msra.mxu0 0.0
        %558 = vmatprep.subr.mxu0 0.0
        %559 = vmatpush2.msra.mxu0 0.0
        %560 = vmatprep.subr.mxu0 0.0
        %561 = vmatpush2.msra.mxu0 0.0
        %562 = vmatprep.subr.mxu0 0.0
        %563 = vmatpush2.msra.mxu0 0.0
        %564 = vmatprep.subr.mxu0 0.0
        %565 = vmatpush2.msra.mxu0 0.0
        %566 = vmatprep.subr.mxu0 0.0
        %567 = vmatpush2.msra.mxu0 0.0
        %568 = vmatprep.subr.mxu0 0.0
        %569 = vmatpush2.msra.mxu0 0.0
        %570 = vmatprep.subr.mxu0 0.0
        %571 = vmatpush2.msra.mxu0 0.0
        %572 = vmatprep.subr.mxu0 0.0
        %573 = vmatpush2.msra.mxu0 0.0
        %574 = vmatprep.subr.mxu0 0.0
        %575 = vmatpush2.msra.mxu0 0.0
        %576 = vmatprep.subr.mxu0 0.0
        %577 = vmatpush2.msra.mxu0 0.0
        %578 = vmatprep.subr.mxu0 0.0
        %579 = vmatpush2.msra.mxu0 0.0
        %580 = vmatprep.subr.mxu0 0.0
        %581 = vmatpush2.msra.mxu0 0.0
        %582 = vmatprep.subr.mxu0 0.0
        %583 = vmatpush2.msra.mxu0 0.0
        %584 = vmatprep.subr.mxu0 0.0
        %585 = vmatpush2.msra.mxu0 0.0
        %586 = vmatprep.subr.mxu0 0.0
        %587 = vmatpush2.msra.mxu0 0.0
        %588 = vmatprep.mubr.f32.mxu0 0.0
        %589 = vmatmul.mubr.f32.gmra.mxu0 %v519
        %v590 = vpop.f32.mrf.mxu0
        %v591 = vadd.f32 0.0, %v590
        %v592 = vpop.f32.mrf.mxu0
        %593 = vmatprep.mubr.f32.mxu0 0.0
        %594 = vmatmul.mubr.f32.gmra.mxu0 %v522
        %v595 = vpop.f32.mrf.mxu0
        %v596 = vadd.f32 0.0, %v595
        %v597 = vpop.f32.mrf.mxu0
        %598 = vdwg.mxu0
        %v599 = vadd.f32 %v499, %v591
        %v600 = vadd.f32 %v504, %v596
        %v601 = vld [vmem:[%s2] sm:$0x1]
        %v603 = vlaneseq
        %v604 = vshrl.u32 %v603, 7
        %v605 = vsub.s32 0, %v604
        %v606 = vrot.slane %v601, %v605
        %v608 = vadd.f32 %v599, %v606
        %v609 = vadd.f32 %v600, %v606
        %v610 = vmax.f32 %v608, 0.0
        %v611 = vmax.f32 %v609, 0.0
        %612 = vst [vmem:[#allocation3 + $0x1] sm:$0xff] %v610
        %613 = vst [vmem:[#allocation3 + $0x9] sm:$0xff] %v611
        %v614 = vld [vmem:[#allocation2 + $0x1] sm:$0xff]
        %v615 = vld [vmem:[#allocation2 + $0x9] sm:$0xff]
        %v616 = vld [vmem:[#allocation10] sm:$0xff]
        %v617 = vld [vmem:[#allocation10 + $0x8] sm:$0xff]
        %v618 = vld [vmem:[#allocation10 + $0x10] sm:$0xff]
        %v619 = vld [vmem:[#allocation10 + $0x18] sm:$0xff]
        %v620 = vld [vmem:[#allocation10 + $0x20] sm:$0xff]
        %v621 = vld [vmem:[#allocation10 + $0x28] sm:$0xff]
        %v622 = vld [vmem:[#allocation10 + $0x30] sm:$0xff]
        %v623 = vld [vmem:[#allocation10 + $0x38] sm:$0xff]
        %v624 = vld [vmem:[#allocation3] sm:$0xff]
        %v625 = vld [vmem:[#allocation3 + $0x8] sm:$0xff]
        %v626 = vld [vmem:[#allocation9] sm:$0xff]
        %v627 = vld [vmem:[#allocation9 + $0x8] sm:$0xff]
        %v628 = vld [vmem:[#allocation9 + $0x10] sm:$0xff]
        %v629 = vld [vmem:[#allocation9 + $0x18] sm:$0xff]
        %v630 = vld [vmem:[#allocation9 + $0x20] sm:$0xff]
        %v631 = vld [vmem:[#allocation9 + $0x28] sm:$0xff]
        %v632 = vld [vmem:[#allocation9 + $0x30] sm:$0xff]
        %v633 = vld [vmem:[#allocation9 + $0x38] sm:$0xff]
        %v634 = vld [vmem:[#allocation9 + $0x40] sm:$0xff]
        %v635 = vld [vmem:[#allocation9 + $0x48] sm:$0xff]
        %v636 = vld [vmem:[#allocation9 + $0x50] sm:$0xff]
        %v637 = vld [vmem:[#allocation9 + $0x58] sm:$0xff]
        %v638 = vld [vmem:[#allocation9 + $0x60] sm:$0xff]
        %v639 = vld [vmem:[#allocation9 + $0x68] sm:$0xff]
        %v640 = vld [vmem:[#allocation9 + $0x70] sm:$0xff]
        %v641 = vld [vmem:[#allocation9 + $0x78] sm:$0xff]
        %642 = vmatprep.subr.mxu0 0.0
        %643 = vmatpush1.msra.mxu0 %v641
        %644 = vmatprep.subr.mxu0 0.0
        %645 = vmatpush1.msra.mxu0 %v640
        %646 = vmatprep.subr.mxu0 0.0
        %647 = vmatpush1.msra.mxu0 %v639
        %648 = vmatprep.subr.mxu0 0.0
        %649 = vmatpush1.msra.mxu0 %v638
        %650 = vmatprep.subr.mxu0 0.0
        %651 = vmatpush1.msra.mxu0 %v637
        %652 = vmatprep.subr.mxu0 0.0
        %653 = vmatpush1.msra.mxu0 %v636
        %654 = vmatprep.subr.mxu0 0.0
        %655 = vmatpush1.msra.mxu0 %v635
        %656 = vmatprep.subr.mxu0 0.0
        %657 = vmatpush1.msra.mxu0 %v634
        %658 = vmatprep.subr.mxu0 0.0
        %659 = vmatpush1.msra.mxu0 %v633
        %660 = vmatprep.subr.mxu0 0.0
        %661 = vmatpush1.msra.mxu0 %v632
        %662 = vmatprep.subr.mxu0 0.0
        %663 = vmatpush1.msra.mxu0 %v631
        %664 = vmatprep.subr.mxu0 0.0
        %665 = vmatpush1.msra.mxu0 %v630
        %666 = vmatprep.subr.mxu0 0.0
        %667 = vmatpush1.msra.mxu0 %v629
        %668 = vmatprep.subr.mxu0 0.0
        %669 = vmatpush1.msra.mxu0 %v628
        %670 = vmatprep.subr.mxu0 0.0
        %671 = vmatpush1.msra.mxu0 %v627
        %672 = vmatprep.subr.mxu0 0.0
        %673 = vmatpush1.msra.mxu0 %v626
        %674 = vmatprep.subr.mxu0 0.0
        %675 = vmatpush2.msra.mxu0 0.0
        %676 = vmatprep.subr.mxu0 0.0
        %677 = vmatpush2.msra.mxu0 0.0
        %678 = vmatprep.subr.mxu0 0.0
        %679 = vmatpush2.msra.mxu0 0.0
        %680 = vmatprep.subr.mxu0 0.0
        %681 = vmatpush2.msra.mxu0 0.0
        %682 = vmatprep.subr.mxu0 0.0
        %683 = vmatpush2.msra.mxu0 0.0
        %684 = vmatprep.subr.mxu0 0.0
        %685 = vmatpush2.msra.mxu0 0.0
        %686 = vmatprep.subr.mxu0 0.0
        %687 = vmatpush2.msra.mxu0 0.0
        %688 = vmatprep.subr.mxu0 0.0
        %689 = vmatpush2.msra.mxu0 0.0
        %690 = vmatprep.subr.mxu0 0.0
        %691 = vmatpush2.msra.mxu0 0.0
        %692 = vmatprep.subr.mxu0 0.0
        %693 = vmatpush2.msra.mxu0 0.0
        %694 = vmatprep.subr.mxu0 0.0
        %695 = vmatpush2.msra.mxu0 0.0
        %696 = vmatprep.subr.mxu0 0.0
        %697 = vmatpush2.msra.mxu0 0.0
        %698 = vmatprep.subr.mxu0 0.0
        %699 = vmatpush2.msra.mxu0 0.0
        %700 = vmatprep.subr.mxu0 0.0
        %701 = vmatpush2.msra.mxu0 0.0
        %702 = vmatprep.subr.mxu0 0.0
        %703 = vmatpush2.msra.mxu0 0.0
        %704 = vmatprep.subr.mxu0 0.0
        %705 = vmatpush2.msra.mxu0 0.0
        %706 = vmatprep.mubr.f32.mxu0 0.0
        %707 = vmatmul.mubr.f32.gmra.mxu0 %v624
        %v708 = vpop.f32.mrf.mxu0
        %v709 = vadd.f32 0.0, %v708
        %v710 = vpop.f32.mrf.mxu0
        %711 = vmatprep.mubr.f32.mxu0 0.0
        %712 = vmatmul.mubr.f32.gmra.mxu0 %v625
        %v713 = vpop.f32.mrf.mxu0
        %v714 = vadd.f32 0.0, %v713
        %v715 = vpop.f32.mrf.mxu0
        %716 = vdwg.mxu0
        %v718 = vsel %vm321, %v614, 0
        %v721 = vsel %vm321, %v615, 0
        %723 = vmatprep.subr.mxu0 0.0
        %724 = vmatpush1.msra.mxu0 0.0
        %725 = vmatprep.subr.mxu0 0.0
        %726 = vmatpush1.msra.mxu0 0.0
        %727 = vmatprep.subr.mxu0 0.0
        %728 = vmatpush1.msra.mxu0 0.0
        %729 = vmatprep.subr.mxu0 0.0
        %730 = vmatpush1.msra.mxu0 0.0
        %731 = vmatprep.subr.mxu0 0.0
        %732 = vmatpush1.msra.mxu0 0.0
        %733 = vmatprep.subr.mxu0 0.0
        %734 = vmatpush1.msra.mxu0 0.0
        %735 = vmatprep.subr.mxu0 0.0
        %736 = vmatpush1.msra.mxu0 0.0
        %737 = vmatprep.subr.mxu0 0.0
        %738 = vmatpush1.msra.mxu0 0.0
        %739 = vmatprep.subr.mxu0 0.0
        %740 = vmatpush1.msra.mxu0 %v623
        %741 = vmatprep.subr.mxu0 0.0
        %742 = vmatpush1.msra.mxu0 %v622
        %743 = vmatprep.subr.mxu0 0.0
        %744 = vmatpush1.msra.mxu0 %v621
        %745 = vmatprep.subr.mxu0 0.0
        %746 = vmatpush1.msra.mxu0 %v620
        %747 = vmatprep.subr.mxu0 0.0
        %748 = vmatpush1.msra.mxu0 %v619
        %749 = vmatprep.subr.mxu0 0.0
        %750 = vmatpush1.msra.mxu0 %v618
        %751 = vmatprep.subr.mxu0 0.0
        %752 = vmatpush1.msra.mxu0 %v617
        %753 = vmatprep.subr.mxu0 0.0
        %754 = vmatpush1.msra.mxu0 %v616
        %755 = vmatprep.subr.mxu0 0.0
        %756 = vmatpush2.msra.mxu0 0.0
        %757 = vmatprep.subr.mxu0 0.0
        %758 = vmatpush2.msra.mxu0 0.0
        %759 = vmatprep.subr.mxu0 0.0
        %760 = vmatpush2.msra.mxu0 0.0
        %761 = vmatprep.subr.mxu0 0.0
        %762 = vmatpush2.msra.mxu0 0.0
        %763 = vmatprep.subr.mxu0 0.0
        %764 = vmatpush2.msra.mxu0 0.0
        %765 = vmatprep.subr.mxu0 0.0
        %766 = vmatpush2.msra.mxu0 0.0
        %767 = vmatprep.subr.mxu0 0.0
        %768 = vmatpush2.msra.mxu0 0.0
        %769 = vmatprep.subr.mxu0 0.0
        %770 = vmatpush2.msra.mxu0 0.0
        %771 = vmatprep.subr.mxu0 0.0
        %772 = vmatpush2.msra.mxu0 0.0
        %773 = vmatprep.subr.mxu0 0.0
        %774 = vmatpush2.msra.mxu0 0.0
        %775 = vmatprep.subr.mxu0 0.0
        %776 = vmatpush2.msra.mxu0 0.0
        %777 = vmatprep.subr.mxu0 0.0
        %778 = vmatpush2.msra.mxu0 0.0
        %779 = vmatprep.subr.mxu0 0.0
        %780 = vmatpush2.msra.mxu0 0.0
        %781 = vmatprep.subr.mxu0 0.0
        %782 = vmatpush2.msra.mxu0 0.0
        %783 = vmatprep.subr.mxu0 0.0
        %784 = vmatpush2.msra.mxu0 0.0
        %785 = vmatprep.subr.mxu0 0.0
        %786 = vmatpush2.msra.mxu0 0.0
        %787 = vmatprep.mubr.f32.mxu0 0.0
        %788 = vmatmul.mubr.f32.gmra.mxu0 %v718
        %v789 = vpop.f32.mrf.mxu0
        %v790 = vadd.f32 %v709, %v789
        %v791 = vpop.f32.mrf.mxu0
        %792 = vmatprep.mubr.f32.mxu0 0.0
        %793 = vmatmul.mubr.f32.gmra.mxu0 %v721
        %v794 = vpop.f32.mrf.mxu0
        %v795 = vadd.f32 %v714, %v794
        %v796 = vpop.f32.mrf.mxu0
        %797 = vdwg.mxu0
        %v798 = vld [vmem:[#allocation3 + $0x1] sm:$0xff]
        %v799 = vld [vmem:[#allocation3 + $0x9] sm:$0xff]
        %s800 = scalar_lea.vmem [#allocation9], 128
        %v801 = vld [vmem:[%s800] sm:$0xff]
        %v802 = vld [vmem:[%s800 + $0x8] sm:$0xff]
        %v803 = vld [vmem:[%s800 + $0x10] sm:$0xff]
        %v804 = vld [vmem:[%s800 + $0x18] sm:$0xff]
        %v805 = vld [vmem:[%s800 + $0x20] sm:$0xff]
        %v806 = vld [vmem:[%s800 + $0x28] sm:$0xff]
        %v807 = vld [vmem:[%s800 + $0x30] sm:$0xff]
        %v808 = vld [vmem:[%s800 + $0x38] sm:$0xff]
        %v809 = vld [vmem:[%s800 + $0x40] sm:$0xff]
        %v810 = vld [vmem:[%s800 + $0x48] sm:$0xff]
        %v811 = vld [vmem:[%s800 + $0x50] sm:$0xff]
        %v812 = vld [vmem:[%s800 + $0x58] sm:$0xff]
        %v813 = vld [vmem:[%s800 + $0x60] sm:$0xff]
        %v814 = vld [vmem:[%s800 + $0x68] sm:$0xff]
        %v815 = vld [vmem:[%s800 + $0x70] sm:$0xff]
        %v816 = vld [vmem:[%s800 + $0x78] sm:$0xff]
        %817 = vmatprep.subr.mxu0 0.0
        %818 = vmatpush1.msra.mxu0 %v816
        %819 = vmatprep.subr.mxu0 0.0
        %820 = vmatpush1.msra.mxu0 %v815
        %821 = vmatprep.subr.mxu0 0.0
        %822 = vmatpush1.msra.mxu0 %v814
        %823 = vmatprep.subr.mxu0 0.0
        %824 = vmatpush1.msra.mxu0 %v813
        %825 = vmatprep.subr.mxu0 0.0
        %826 = vmatpush1.msra.mxu0 %v812
        %827 = vmatprep.subr.mxu0 0.0
        %828 = vmatpush1.msra.mxu0 %v811
        %829 = vmatprep.subr.mxu0 0.0
        %830 = vmatpush1.msra.mxu0 %v810
        %831 = vmatprep.subr.mxu0 0.0
        %832 = vmatpush1.msra.mxu0 %v809
        %833 = vmatprep.subr.mxu0 0.0
        %834 = vmatpush1.msra.mxu0 %v808
        %835 = vmatprep.subr.mxu0 0.0
        %836 = vmatpush1.msra.mxu0 %v807
        %837 = vmatprep.subr.mxu0 0.0
        %838 = vmatpush1.msra.mxu0 %v806
        %839 = vmatprep.subr.mxu0 0.0
        %840 = vmatpush1.msra.mxu0 %v805
        %841 = vmatprep.subr.mxu0 0.0
        %842 = vmatpush1.msra.mxu0 %v804
        %843 = vmatprep.subr.mxu0 0.0
        %844 = vmatpush1.msra.mxu0 %v803
        %845 = vmatprep.subr.mxu0 0.0
        %846 = vmatpush1.msra.mxu0 %v802
        %847 = vmatprep.subr.mxu0 0.0
        %848 = vmatpush1.msra.mxu0 %v801
        %849 = vmatprep.subr.mxu0 0.0
        %850 = vmatpush2.msra.mxu0 0.0
        %851 = vmatprep.subr.mxu0 0.0
        %852 = vmatpush2.msra.mxu0 0.0
        %853 = vmatprep.subr.mxu0 0.0
        %854 = vmatpush2.msra.mxu0 0.0
        %855 = vmatprep.subr.mxu0 0.0
        %856 = vmatpush2.msra.mxu0 0.0
        %857 = vmatprep.subr.mxu0 0.0
        %858 = vmatpush2.msra.mxu0 0.0
        %859 = vmatprep.subr.mxu0 0.0
        %860 = vmatpush2.msra.mxu0 0.0
        %861 = vmatprep.subr.mxu0 0.0
        %862 = vmatpush2.msra.mxu0 0.0
        %863 = vmatprep.subr.mxu0 0.0
        %864 = vmatpush2.msra.mxu0 0.0
        %865 = vmatprep.subr.mxu0 0.0
        %866 = vmatpush2.msra.mxu0 0.0
        %867 = vmatprep.subr.mxu0 0.0
        %868 = vmatpush2.msra.mxu0 0.0
        %869 = vmatprep.subr.mxu0 0.0
        %870 = vmatpush2.msra.mxu0 0.0
        %871 = vmatprep.subr.mxu0 0.0
        %872 = vmatpush2.msra.mxu0 0.0
        %873 = vmatprep.subr.mxu0 0.0
        %874 = vmatpush2.msra.mxu0 0.0
        %875 = vmatprep.subr.mxu0 0.0
        %876 = vmatpush2.msra.mxu0 0.0
        %877 = vmatprep.subr.mxu0 0.0
        %878 = vmatpush2.msra.mxu0 0.0
        %879 = vmatprep.subr.mxu0 0.0
        %880 = vmatpush2.msra.mxu0 0.0
        %881 = vmatprep.mubr.f32.mxu0 0.0
        %882 = vmatmul.mubr.f32.gmra.mxu0 %v798
        %v883 = vpop.f32.mrf.mxu0
        %v884 = vadd.f32 0.0, %v883
        %v885 = vpop.f32.mrf.mxu0
        %886 = vmatprep.mubr.f32.mxu0 0.0
        %887 = vmatmul.mubr.f32.gmra.mxu0 %v799
        %v888 = vpop.f32.mrf.mxu0
        %v889 = vadd.f32 0.0, %v888
        %v890 = vpop.f32.mrf.mxu0
        %891 = vdwg.mxu0
        %v892 = vadd.f32 %v790, %v884
        %v893 = vadd.f32 %v795, %v889
        %v894 = vld [vmem:[#allocation3 + $0x2] sm:$0xff]
        %v895 = vld [vmem:[#allocation3 + $0xa] sm:$0xff]
        %s896 = scalar_lea.vmem [#allocation9], 256
        %v897 = vld [vmem:[%s896] sm:$0xff]
        %v898 = vld [vmem:[%s896 + $0x8] sm:$0xff]
        %v899 = vld [vmem:[%s896 + $0x10] sm:$0xff]
        %v900 = vld [vmem:[%s896 + $0x18] sm:$0xff]
        %v901 = vld [vmem:[%s896 + $0x20] sm:$0xff]
        %v902 = vld [vmem:[%s896 + $0x28] sm:$0xff]
        %v903 = vld [vmem:[%s896 + $0x30] sm:$0xff]
        %v904 = vld [vmem:[%s896 + $0x38] sm:$0xff]
        %v905 = vld [vmem:[%s896 + $0x40] sm:$0xff]
        %v906 = vld [vmem:[%s896 + $0x48] sm:$0xff]
        %v907 = vld [vmem:[%s896 + $0x50] sm:$0xff]
        %v908 = vld [vmem:[%s896 + $0x58] sm:$0xff]
        %v909 = vld [vmem:[%s896 + $0x60] sm:$0xff]
        %v910 = vld [vmem:[%s896 + $0x68] sm:$0xff]
        %v911 = vld [vmem:[%s896 + $0x70] sm:$0xff]
        %v912 = vld [vmem:[%s896 + $0x78] sm:$0xff]
        %913 = vmatprep.subr.mxu0 0.0
        %914 = vmatpush1.msra.mxu0 %v912
        %915 = vmatprep.subr.mxu0 0.0
        %916 = vmatpush1.msra.mxu0 %v911
        %917 = vmatprep.subr.mxu0 0.0
        %918 = vmatpush1.msra.mxu0 %v910
        %919 = vmatprep.subr.mxu0 0.0
        %920 = vmatpush1.msra.mxu0 %v909
        %921 = vmatprep.subr.mxu0 0.0
        %922 = vmatpush1.msra.mxu0 %v908
        %923 = vmatprep.subr.mxu0 0.0
        %924 = vmatpush1.msra.mxu0 %v907
        %925 = vmatprep.subr.mxu0 0.0
        %926 = vmatpush1.msra.mxu0 %v906
        %927 = vmatprep.subr.mxu0 0.0
        %928 = vmatpush1.msra.mxu0 %v905
        %929 = vmatprep.subr.mxu0 0.0
        %930 = vmatpush1.msra.mxu0 %v904
        %931 = vmatprep.subr.mxu0 0.0
        %932 = vmatpush1.msra.mxu0 %v903
        %933 = vmatprep.subr.mxu0 0.0
        %934 = vmatpush1.msra.mxu0 %v902
        %935 = vmatprep.subr.mxu0 0.0
        %936 = vmatpush1.msra.mxu0 %v901
        %937 = vmatprep.subr.mxu0 0.0
        %938 = vmatpush1.msra.mxu0 %v900
        %939 = vmatprep.subr.mxu0 0.0
        %940 = vmatpush1.msra.mxu0 %v899
        %941 = vmatprep.subr.mxu0 0.0
        %942 = vmatpush1.msra.mxu0 %v898
        %943 = vmatprep.subr.mxu0 0.0
        %944 = vmatpush1.msra.mxu0 %v897
        %945 = vmatprep.subr.mxu0 0.0
        %946 = vmatpush2.msra.mxu0 0.0
        %947 = vmatprep.subr.mxu0 0.0
        %948 = vmatpush2.msra.mxu0 0.0
        %949 = vmatprep.subr.mxu0 0.0
        %950 = vmatpush2.msra.mxu0 0.0
        %951 = vmatprep.subr.mxu0 0.0
        %952 = vmatpush2.msra.mxu0 0.0
        %953 = vmatprep.subr.mxu0 0.0
        %954 = vmatpush2.msra.mxu0 0.0
        %955 = vmatprep.subr.mxu0 0.0
        %956 = vmatpush2.msra.mxu0 0.0
        %957 = vmatprep.subr.mxu0 0.0
        %958 = vmatpush2.msra.mxu0 0.0
        %959 = vmatprep.subr.mxu0 0.0
        %960 = vmatpush2.msra.mxu0 0.0
        %961 = vmatprep.subr.mxu0 0.0
        %962 = vmatpush2.msra.mxu0 0.0
        %963 = vmatprep.subr.mxu0 0.0
        %964 = vmatpush2.msra.mxu0 0.0
        %965 = vmatprep.subr.mxu0 0.0
        %966 = vmatpush2.msra.mxu0 0.0
        %967 = vmatprep.subr.mxu0 0.0
        %968 = vmatpush2.msra.mxu0 0.0
        %969 = vmatprep.subr.mxu0 0.0
        %970 = vmatpush2.msra.mxu0 0.0
        %971 = vmatprep.subr.mxu0 0.0
        %972 = vmatpush2.msra.mxu0 0.0
        %973 = vmatprep.subr.mxu0 0.0
        %974 = vmatpush2.msra.mxu0 0.0
        %975 = vmatprep.subr.mxu0 0.0
        %976 = vmatpush2.msra.mxu0 0.0
        %977 = vmatprep.mubr.f32.mxu0 0.0
        %978 = vmatmul.mubr.f32.gmra.mxu0 %v894
        %v979 = vpop.f32.mrf.mxu0
        %v980 = vadd.f32 0.0, %v979
        %v981 = vpop.f32.mrf.mxu0
        %982 = vmatprep.mubr.f32.mxu0 0.0
        %983 = vmatmul.mubr.f32.gmra.mxu0 %v895
        %v984 = vpop.f32.mrf.mxu0
        %v985 = vadd.f32 0.0, %v984
        %v986 = vpop.f32.mrf.mxu0
        %987 = vdwg.mxu0
        %v988 = vadd.f32 %v892, %v980
        %v989 = vadd.f32 %v893, %v985
        %v990 = vld [vmem:[%s4] sm:$0x1]
        %v992 = vlaneseq
        %v993 = vshrl.u32 %v992, 7
        %v994 = vsub.s32 0, %v993
        %v995 = vrot.slane %v990, %v994
        %v997 = vadd.f32 %v988, %v995
        %v998 = vadd.f32 %v989, %v995
        %v999 = vmax.f32 %v997, 0.0
        %v1000 = vmax.f32 %v998, 0.0
        %1001 = vst [vmem:[%s313] sm:$0xff] %v999
        %1002 = vst [vmem:[%s313 + $0x8] sm:$0xff] %v1000
        %s1003 = sand.u32 %s164, 1
        %s1004 = scalar_lea.sflag [#allocation6], %s1003
        %s1005 = sand.u32 %s164, 1
        %s1006 = smul.addr %s1005, 16
        %s1007 = scalar_lea.vmem [#allocation12], %s1006
        // Predicated region
        $region61: #{tpu_custom_call.1} parent=43 // pred_check
          %p1008 = pneg %p174
        $region62: #{tpu_custom_call.1} parent=43 // pred_check_branch
          %1010 = sbr.rel (%p1008) target = $region64
        $region63: #{tpu_custom_call.1} parent=43 // pred_region
          %s1012 = ssub.s32 256, 256
          %1013 = vsyncadd %s1004, %s1012
          %s1014 = smul.addr %s25, 2
          %s1015 = smul.addr %s1014, 128
          %s1016 = scalar_lea.hbm %s6, %s1015
          %s1017 = sshll.u32 %s1007, 4
          %s1018 = int_to_ptr.vmem [resolvable:$true] %s1017
          %1023 = dma.vmem_to_hbm [thread:$0]  %s1018, 256, %s1016, %s1004, 128, 128, 8
        $region64: #{tpu_custom_call.1} parent=43 // pred_fallthru
          _
      $region44: #{tpu_custom_call.1} parent=5 // pred_fallthru
        _
      %p1024 = scmp.le.s32.totalorder 2, %s20
      // Predicated region
      $region65: #{tpu_custom_call.1} parent=5 // pred_check
        %p1025 = pneg %p1024
      $region66: #{tpu_custom_call.1} parent=5 // pred_check_branch
        %1027 = sbr.rel (%p1025) target = $region68
      $region67: #{tpu_custom_call.1} parent=5 // pred_region
        %s1028 = ssub.s32 %s20, 2
        // Predicated region
        $region69: #{tpu_custom_call.1} parent=67 // pred_check
          %p1029 = pneg %p180
        $region70: #{tpu_custom_call.1} parent=67 // pred_check_branch
          %1031 = sbr.rel (%p1029) target = $region72
        $region71: #{tpu_custom_call.1} parent=67 // pred_region
          %s1032 = sand.u32 %s165, 1
          %s1033 = scalar_lea.sflag [#allocation6], %s1032
          %s1034 = sand.u32 %s165, 1
          %s1035 = smul.addr %s1034, 16
          %s1036 = scalar_lea.vmem [#allocation12], %s1035
          %1037 = dma.done %s1033, 256
        $region72: #{tpu_custom_call.1} parent=67 // pred_fallthru
          _
      $region68: #{tpu_custom_call.1} parent=5 // pred_fallthru
        _
    $region6: #{tpu_custom_call.1} parent=1 // loop_footer
      %s24 = sadd.s32 1, %s20
    $region7: #{tpu_custom_call.1} parent=1 // loop_footer_branch
      %19 = sbr.rel target = $region3
    $region8: #{tpu_custom_call.1} parent=1 // loop_exit
      _
    %1038 = vsyncpa [#allocation5], 1
    %s1039 = scalar_lea.sflag [#allocation5], 1
    %1040 = vsyncpa %s1039, 1
    %1041 = vsyncpa [#allocation8], 1
    %1042 = vsyncpa [#allocation11], 1
    %1043 = vsyncpa [#allocation6], 1
    %s1044 = scalar_lea.sflag [#allocation6], 1
    %1045 = vsyncpa %s1044, 1

</llo_original>
